<compile_context>
chip_gen: v6e
topology: v6e:2x2x1
jax: 0.10.0
libtpu: 0.0.40
codegen_flags: <defaults>
</compile_context>

<pallas_src>
import functools

import jax
import jax.numpy as jnp
from jax.experimental import pallas as pl
from jax.experimental.pallas import tpu as pltpu


LANE = 128
_NEG_BIG = -1.0e30  # softmax padding bias -> exp() underflows to exactly 0


def _round_up(x, m):
    return ((x + m - 1) // m) * m


def _a2c_kernel(x_ref,
                w1a_ref, b1a_ref, w2a_ref, b2a_ref, w3a_ref, b3a_ref,
                w1c_ref, b1c_ref, w2c_ref, b2c_ref, w3c_ref, b3c_ref,
                val_ref, pol_ref):
    """One batch tile of the fused actor/critic forward pass."""
    x = x_ref[...]                       # [TB, n_obs] (compute dtype, e.g. bf16)
    cd = w1a_ref.dtype                   # MXU operand dtype

    # ---------------- Actor ----------------
    h = jnp.dot(x, w1a_ref[...], preferred_element_type=jnp.float32)
    h = jnp.maximum(h + b1a_ref[...], 0.0)                       # f32 VPU work
    h = jnp.dot(h.astype(cd), w2a_ref[...], preferred_element_type=jnp.float32)
    h = jnp.maximum(h + b2a_ref[...], 0.0)
    logits = jnp.dot(h.astype(cd), w3a_ref[...], preferred_element_type=jnp.float32)
    logits = logits + b3a_ref[...]                               # padded lanes = -1e30

    # Softmax over the (padded) action lanes; padded lanes get probability 0.
    m = jnp.max(logits, axis=-1, keepdims=True)
    e = jnp.exp(logits - m)
    pol = e / jnp.sum(e, axis=-1, keepdims=True)
    pol_ref[...] = pol.astype(pol_ref.dtype)                     # full-lane store

    # ---------------- Critic ----------------
    g = jnp.dot(x, w1c_ref[...], preferred_element_type=jnp.float32)
    g = jnp.maximum(g + b1c_ref[...], 0.0)
    g = jnp.dot(g.astype(cd), w2c_ref[...], preferred_element_type=jnp.float32)
    g = jnp.maximum(g + b2c_ref[...], 0.0)
    v = jnp.dot(g.astype(cd), w3c_ref[...], preferred_element_type=jnp.float32)
    val_ref[...] = (v + b3c_ref[...]).astype(val_ref.dtype)      # full-lane store


@functools.partial(jax.jit, static_argnames=("compute_dtype",))
def linear_a2c_forward(x, params, compute_dtype=jnp.bfloat16):
    """Fused LinearA2C forward.

    Args:
      x: [B, n_observations] float32 state.
      params: dict with actor (w1a,b1a,w2a,b2a,w3a,b3a) and critic
              (w1c,b1c,w2c,b2c,w3c,b3c) weights stored as [in, out].
      compute_dtype: MXU operand dtype (bf16 recommended on v6e/v7x).
    Returns:
      (value [B, 1] float32, policy [B, n_actions] float32)
    """
    B, n_obs = x.shape
    n_actions = params["w3a"].shape[1]
    a_pad = _round_up(n_actions, LANE)   # lane-dense actor output width
    v_pad = LANE                         # lane-dense critic output width
    f32 = jnp.float32

    # --- weights: cast to MXU dtype; pad final layers to lane-dense width ---
    w1a = params["w1a"].astype(compute_dtype)
    w2a = params["w2a"].astype(compute_dtype)
    w3a = jnp.zeros((params["w3a"].shape[0], a_pad), compute_dtype)
    w3a = w3a.at[:, :n_actions].set(params["w3a"].astype(compute_dtype))
    w1c = params["w1c"].astype(compute_dtype)
    w2c = params["w2c"].astype(compute_dtype)
    w3c = jnp.zeros((params["w3c"].shape[0], v_pad), compute_dtype)
    w3c = w3c.at[:, :1].set(params["w3c"].astype(compute_dtype))

    # --- biases: keep f32 (elementwise path stays f32), as [1, N] rows ---
    b1a = params["b1a"].reshape(1, -1).astype(f32)
    b2a = params["b2a"].reshape(1, -1).astype(f32)
    b3a = jnp.full((1, a_pad), _NEG_BIG, f32)
    b3a = b3a.at[:, :n_actions].set(params["b3a"].reshape(1, -1).astype(f32))
    b1c = params["b1c"].reshape(1, -1).astype(f32)
    b2c = params["b2c"].reshape(1, -1).astype(f32)
    b3c = jnp.zeros((1, v_pad), f32)
    b3c = b3c.at[:, :1].set(params["b3c"].reshape(1, -1).astype(f32))

    # --- batch tiling: pad B to a multiple of the tile, stream x / outputs ---
    TB = min(512, _round_up(B, 16))      # multiple of 16 (bf16 sublane packing)
    B_pad = _round_up(B, TB)
    x_p = jnp.zeros((B_pad, n_obs), compute_dtype).at[:B].set(x.astype(compute_dtype))
    grid = (B_pad // TB,)

    def resident(arr):                   # weights/biases: same block every step
        return pl.BlockSpec(arr.shape, lambda i: (0, 0))

    x_spec = pl.BlockSpec((TB, n_obs), lambda i: (i, 0))
    val_spec = pl.BlockSpec((TB, v_pad), lambda i: (i, 0))
    pol_spec = pl.BlockSpec((TB, a_pad), lambda i: (i, 0))

    val_p, pol_p = pl.pallas_call(
        _a2c_kernel,
        out_shape=(jax.ShapeDtypeStruct((B_pad, v_pad), f32),
                   jax.ShapeDtypeStruct((B_pad, a_pad), f32)),
        grid=grid,
        in_specs=[
            x_spec,
            resident(w1a), resident(b1a), resident(w2a), resident(b2a),
            resident(w3a), resident(b3a),
            resident(w1c), resident(b1c), resident(w2c), resident(b2c),
            resident(w3c), resident(b3c),
        ],
        out_specs=(val_spec, pol_spec),
        compiler_params=pltpu.CompilerParams(
            dimension_semantics=("parallel",)),
    )(x_p,
      w1a, b1a, w2a, b2a, w3a, b3a,
      w1c, b1c, w2c, b2c, w3c, b3c)

    return val_p[:B, :1], pol_p[:B, :n_actions]


def init_params(key, n_observations, n_actions, hidden=64):
    """Mimics nn.Linear's U(-1/sqrt(fan_in), 1/sqrt(fan_in)) init.

    Weights stored as [in_features, out_features] (transposed vs PyTorch).
    """
    keys = jax.random.split(key, 12)

    def layer(kw, kb, fan_in, fan_out):
        bound = 1.0 / jnp.sqrt(fan_in)
        w = jax.random.uniform(kw, (fan_in, fan_out), jnp.float32, -bound, bound)
        b = jax.random.uniform(kb, (fan_out,), jnp.float32, -bound, bound)
        return w, b

    w1a, b1a = layer(keys[0], keys[1], n_observations, hidden)
    w2a, b2a = layer(keys[2], keys[3], hidden, hidden)
    w3a, b3a = layer(keys[4], keys[5], hidden, n_actions)
    w1c, b1c = layer(keys[6], keys[7], n_observations, hidden)
    w2c, b2c = layer(keys[8], keys[9], hidden, hidden)
    w3c, b3c = layer(keys[10], keys[11], hidden, 1)
    return {"w1a": w1a, "b1a": b1a, "w2a": w2a, "b2a": b2a, "w3a": w3a, "b3a": b3a,
            "w1c": w1c, "b1c": b1c, "w2c": w2c, "b2c": b2c, "w3c": w3c, "b3c": b3c}


def _reference_forward(x, p, compute_dtype=jnp.bfloat16):
    """Pure-JAX reference with the same bf16-operand / f32-accumulate recipe."""
    cd = compute_dtype
    xc = x.astype(cd)

    def mlp(inp, w1, b1, w2, b2, w3, b3):
        h = jnp.dot(inp, w1.astype(cd), preferred_element_type=jnp.float32) + b1
        h = jnp.maximum(h, 0.0)
        h = jnp.dot(h.astype(cd), w2.astype(cd), preferred_element_type=jnp.float32) + b2
        h = jnp.maximum(h, 0.0)
        return jnp.dot(h.astype(cd), w3.astype(cd), preferred_element_type=jnp.float32) + b3

    logits = mlp(xc, p["w1a"], p["b1a"], p["w2a"], p["b2a"], p["w3a"], p["b3a"])
    pol = jax.nn.softmax(logits, axis=-1)
    val = mlp(xc, p["w1c"], p["b1c"], p["w2c"], p["b2c"], p["w3c"], p["b3c"])
    return val, pol


if __name__ == "__main__":
    key = jax.random.PRNGKey(0)
    k_params, k_x = jax.random.split(key)

    batch = 8
    n_observations = 16   # e.g. one-hot discrete state
    n_actions = 4

    params = init_params(k_params, n_observations, n_actions)
    x = jax.random.normal(k_x, (batch, n_observations), jnp.float32)

    val, pol = linear_a2c_forward(x, params)
    val, pol = jax.block_until_ready((val, pol))

    val_ref, pol_ref = _reference_forward(x, params)

    assert val.shape == (batch, 1)
    assert pol.shape == (batch, n_actions)
    # bf16 MXU operands -> looser tolerance than pure f32
    assert jnp.allclose(val, val_ref, atol=2e-2, rtol=2e-2)
    assert jnp.allclose(pol, pol_ref, atol=2e-2, rtol=2e-2)
    # policy rows are valid distributions
    assert jnp.allclose(jnp.sum(pol, axis=-1), 1.0, atol=1e-3)

    print("KERNEL_OK")
</pallas_src>

<mosaic_0001>
module attributes {stable_mosaic.version = 11 : i64} {
  func.func @_a2c_kernel(%arg0: i32, %arg1: memref<16x16xbf16, #tpu.memory_space<vmem>>, %arg2: memref<16x64xbf16, #tpu.memory_space<vmem>>, %arg3: memref<1x64xf32, #tpu.memory_space<vmem>>, %arg4: memref<64x64xbf16, #tpu.memory_space<vmem>>, %arg5: memref<1x64xf32, #tpu.memory_space<vmem>>, %arg6: memref<64x128xbf16, #tpu.memory_space<vmem>>, %arg7: memref<1x128xf32, #tpu.memory_space<vmem>>, %arg8: memref<16x64xbf16, #tpu.memory_space<vmem>>, %arg9: memref<1x64xf32, #tpu.memory_space<vmem>>, %arg10: memref<64x64xbf16, #tpu.memory_space<vmem>>, %arg11: memref<1x64xf32, #tpu.memory_space<vmem>>, %arg12: memref<64x128xbf16, #tpu.memory_space<vmem>>, %arg13: memref<1x128xf32, #tpu.memory_space<vmem>>, %arg14: memref<16x128xf32, #tpu.memory_space<vmem>>, %arg15: memref<16x128xf32, #tpu.memory_space<vmem>>) attributes {dimension_semantics = [#tpu.dimension_semantics<parallel>], iteration_bounds = array<i64: 1>, scalar_prefetch = 0 : i64, scratch_operands = 0 : i64, tpu.core_type = #tpu.core_type<tc>, window_params = [{transform_indices = @transform_0, window_bounds = array<i64: 16, 16>}, {pipeline_mode = #tpu.pipeline_mode<synchronous>, transform_indices = @transform_1, window_bounds = array<i64: 16, 64>}, {pipeline_mode = #tpu.pipeline_mode<synchronous>, transform_indices = @transform_2, window_bounds = array<i64: 1, 64>}, {pipeline_mode = #tpu.pipeline_mode<synchronous>, transform_indices = @transform_3, window_bounds = array<i64: 64, 64>}, {pipeline_mode = #tpu.pipeline_mode<synchronous>, transform_indices = @transform_4, window_bounds = array<i64: 1, 64>}, {pipeline_mode = #tpu.pipeline_mode<synchronous>, transform_indices = @transform_5, window_bounds = array<i64: 64, 128>}, {pipeline_mode = #tpu.pipeline_mode<synchronous>, transform_indices = @transform_6, window_bounds = array<i64: 1, 128>}, {pipeline_mode = #tpu.pipeline_mode<synchronous>, transform_indices = @transform_7, window_bounds = array<i64: 16, 64>}, {pipeline_mode = #tpu.pipeline_mode<synchronous>, transform_indices = @transform_8, window_bounds = array<i64: 1, 64>}, {pipeline_mode = #tpu.pipeline_mode<synchronous>, transform_indices = @transform_9, window_bounds = array<i64: 64, 64>}, {pipeline_mode = #tpu.pipeline_mode<synchronous>, transform_indices = @transform_10, window_bounds = array<i64: 1, 64>}, {pipeline_mode = #tpu.pipeline_mode<synchronous>, transform_indices = @transform_11, window_bounds = array<i64: 64, 128>}, {pipeline_mode = #tpu.pipeline_mode<synchronous>, transform_indices = @transform_12, window_bounds = array<i64: 1, 128>}, {transform_indices = @transform_13, window_bounds = array<i64: 16, 128>}, {transform_indices = @transform_14, window_bounds = array<i64: 16, 128>}]} {
    %c0 = arith.constant 0 : index
    %c0_0 = arith.constant 0 : index
    %0 = vector.load %arg1[%c0, %c0_0] : memref<16x16xbf16, #tpu.memory_space<vmem>>, vector<16x16xbf16>
    %c0_1 = arith.constant 0 : index
    %c0_2 = arith.constant 0 : index
    %1 = vector.load %arg2[%c0_1, %c0_2] : memref<16x64xbf16, #tpu.memory_space<vmem>>, vector<16x64xbf16>
    %cst = arith.constant dense<0.000000e+00> : vector<16x64xf32>
    %2 = tpu.matmul %0, %1, %cst {dimension_numbers = #tpu.dot_dimension_numbers<[1], [0], [0], [1], [0, 0, 1, 1], [], []>} : vector<16x16xbf16>, vector<16x64xbf16>, vector<16x64xf32> -> vector<16x64xf32>
    %c0_3 = arith.constant 0 : index
    %c0_4 = arith.constant 0 : index
    %3 = vector.load %arg3[%c0_3, %c0_4] : memref<1x64xf32, #tpu.memory_space<vmem>>, vector<1x64xf32>
    %4 = vector.broadcast %3 : vector<1x64xf32> to vector<16x64xf32>
    %5 = arith.addf %2, %4 : vector<16x64xf32>
    %cst_5 = arith.constant 0.000000e+00 : f32
    %6 = vector.broadcast %cst_5 : f32 to vector<16x64xf32>
    %7 = arith.maximumf %5, %6 : vector<16x64xf32>
    %8 = arith.truncf %7 : vector<16x64xf32> to vector<16x64xbf16>
    %c0_6 = arith.constant 0 : index
    %c0_7 = arith.constant 0 : index
    %9 = vector.load %arg4[%c0_6, %c0_7] : memref<64x64xbf16, #tpu.memory_space<vmem>>, vector<64x64xbf16>
    %cst_8 = arith.constant dense<0.000000e+00> : vector<16x64xf32>
    %10 = tpu.matmul %8, %9, %cst_8 {dimension_numbers = #tpu.dot_dimension_numbers<[1], [0], [0], [1], [0, 0, 1, 1], [], []>} : vector<16x64xbf16>, vector<64x64xbf16>, vector<16x64xf32> -> vector<16x64xf32>
    %c0_9 = arith.constant 0 : index
    %c0_10 = arith.constant 0 : index
    %11 = vector.load %arg5[%c0_9, %c0_10] : memref<1x64xf32, #tpu.memory_space<vmem>>, vector<1x64xf32>
    %12 = vector.broadcast %11 : vector<1x64xf32> to vector<16x64xf32>
    %13 = arith.addf %10, %12 : vector<16x64xf32>
    %cst_11 = arith.constant 0.000000e+00 : f32
    %14 = vector.broadcast %cst_11 : f32 to vector<16x64xf32>
    %15 = arith.maximumf %13, %14 : vector<16x64xf32>
    %16 = arith.truncf %15 : vector<16x64xf32> to vector<16x64xbf16>
    %c0_12 = arith.constant 0 : index
    %c0_13 = arith.constant 0 : index
    %17 = vector.load %arg6[%c0_12, %c0_13] : memref<64x128xbf16, #tpu.memory_space<vmem>>, vector<64x128xbf16>
    %cst_14 = arith.constant dense<0.000000e+00> : vector<16x128xf32>
    %18 = tpu.matmul %16, %17, %cst_14 {dimension_numbers = #tpu.dot_dimension_numbers<[1], [0], [0], [1], [0, 0, 1, 1], [], []>} : vector<16x64xbf16>, vector<64x128xbf16>, vector<16x128xf32> -> vector<16x128xf32>
    %c0_15 = arith.constant 0 : index
    %c0_16 = arith.constant 0 : index
    %19 = vector.load %arg7[%c0_15, %c0_16] : memref<1x128xf32, #tpu.memory_space<vmem>>, vector<1x128xf32>
    %20 = vector.broadcast %19 : vector<1x128xf32> to vector<16x128xf32>
    %21 = arith.addf %18, %20 : vector<16x128xf32>
    %cst_17 = arith.constant dense<0xFF800000> : vector<16xf32>
    %22 = vector.multi_reduction <maximumf>, %21, %cst_17 [1] : vector<16x128xf32> to vector<16xf32>
    %23 = vector.shape_cast %22 : vector<16xf32> to vector<16x1xf32>
    %24 = vector.broadcast %23 : vector<16x1xf32> to vector<16x128xf32>
    %25 = arith.subf %21, %24 : vector<16x128xf32>
    %26 = math.exp %25 : vector<16x128xf32>
    %cst_18 = arith.constant dense<0.000000e+00> : vector<16xf32>
    %27 = vector.multi_reduction <add>, %26, %cst_18 [1] : vector<16x128xf32> to vector<16xf32>
    %28 = vector.shape_cast %27 : vector<16xf32> to vector<16x1xf32>
    %29 = vector.broadcast %28 : vector<16x1xf32> to vector<16x128xf32>
    %30 = arith.divf %26, %29 : vector<16x128xf32>
    %c0_19 = arith.constant 0 : index
    %c0_20 = arith.constant 0 : index
    %31 = vector.load %arg15[%c0_19, %c0_20] : memref<16x128xf32, #tpu.memory_space<vmem>>, vector<16x128xf32>
    tpu.vector_store %arg15[%c0_19, %c0_20], %30 {strides = array<i32>} : memref<16x128xf32, #tpu.memory_space<vmem>>, vector<16x128xf32>,
    %c0_21 = arith.constant 0 : index
    %c0_22 = arith.constant 0 : index
    %32 = vector.load %arg8[%c0_21, %c0_22] : memref<16x64xbf16, #tpu.memory_space<vmem>>, vector<16x64xbf16>
    %cst_23 = arith.constant dense<0.000000e+00> : vector<16x64xf32>
    %33 = tpu.matmul %0, %32, %cst_23 {dimension_numbers = #tpu.dot_dimension_numbers<[1], [0], [0], [1], [0, 0, 1, 1], [], []>} : vector<16x16xbf16>, vector<16x64xbf16>, vector<16x64xf32> -> vector<16x64xf32>
    %c0_24 = arith.constant 0 : index
    %c0_25 = arith.constant 0 : index
    %34 = vector.load %arg9[%c0_24, %c0_25] : memref<1x64xf32, #tpu.memory_space<vmem>>, vector<1x64xf32>
    %35 = vector.broadcast %34 : vector<1x64xf32> to vector<16x64xf32>
    %36 = arith.addf %33, %35 : vector<16x64xf32>
    %cst_26 = arith.constant 0.000000e+00 : f32
    %37 = vector.broadcast %cst_26 : f32 to vector<16x64xf32>
    %38 = arith.maximumf %36, %37 : vector<16x64xf32>
    %39 = arith.truncf %38 : vector<16x64xf32> to vector<16x64xbf16>
    %c0_27 = arith.constant 0 : index
    %c0_28 = arith.constant 0 : index
    %40 = vector.load %arg10[%c0_27, %c0_28] : memref<64x64xbf16, #tpu.memory_space<vmem>>, vector<64x64xbf16>
    %cst_29 = arith.constant dense<0.000000e+00> : vector<16x64xf32>
    %41 = tpu.matmul %39, %40, %cst_29 {dimension_numbers = #tpu.dot_dimension_numbers<[1], [0], [0], [1], [0, 0, 1, 1], [], []>} : vector<16x64xbf16>, vector<64x64xbf16>, vector<16x64xf32> -> vector<16x64xf32>
    %c0_30 = arith.constant 0 : index
    %c0_31 = arith.constant 0 : index
    %42 = vector.load %arg11[%c0_30, %c0_31] : memref<1x64xf32, #tpu.memory_space<vmem>>, vector<1x64xf32>
    %43 = vector.broadcast %42 : vector<1x64xf32> to vector<16x64xf32>
    %44 = arith.addf %41, %43 : vector<16x64xf32>
    %cst_32 = arith.constant 0.000000e+00 : f32
    %45 = vector.broadcast %cst_32 : f32 to vector<16x64xf32>
    %46 = arith.maximumf %44, %45 : vector<16x64xf32>
    %47 = arith.truncf %46 : vector<16x64xf32> to vector<16x64xbf16>
    %c0_33 = arith.constant 0 : index
    %c0_34 = arith.constant 0 : index
    %48 = vector.load %arg12[%c0_33, %c0_34] : memref<64x128xbf16, #tpu.memory_space<vmem>>, vector<64x128xbf16>
    %cst_35 = arith.constant dense<0.000000e+00> : vector<16x128xf32>
    %49 = tpu.matmul %47, %48, %cst_35 {dimension_numbers = #tpu.dot_dimension_numbers<[1], [0], [0], [1], [0, 0, 1, 1], [], []>} : vector<16x64xbf16>, vector<64x128xbf16>, vector<16x128xf32> -> vector<16x128xf32>
    %c0_36 = arith.constant 0 : index
    %c0_37 = arith.constant 0 : index
    %50 = vector.load %arg13[%c0_36, %c0_37] : memref<1x128xf32, #tpu.memory_space<vmem>>, vector<1x128xf32>
    %51 = vector.broadcast %50 : vector<1x128xf32> to vector<16x128xf32>
    %52 = arith.addf %49, %51 : vector<16x128xf32>
    %c0_38 = arith.constant 0 : index
    %c0_39 = arith.constant 0 : index
    %53 = vector.load %arg14[%c0_38, %c0_39] : memref<16x128xf32, #tpu.memory_space<vmem>>, vector<16x128xf32>
    tpu.vector_store %arg14[%c0_38, %c0_39], %52 {strides = array<i32>} : memref<16x128xf32, #tpu.memory_space<vmem>>, vector<16x128xf32>,
    return
  }
  func.func @transform_0(%arg0: i32) -> (i32, i32) {
    %c0_i32 = arith.constant 0 : i32
    %c0_i32_0 = arith.constant 0 : i32
    return %arg0, %c0_i32 : i32, i32
  }
  func.func @transform_1(%arg0: i32) -> (i32, i32) {
    %c0_i32 = arith.constant 0 : i32
    %c0_i32_0 = arith.constant 0 : i32
    %c0_i32_1 = arith.constant 0 : i32
    return %c0_i32, %c0_i32_0 : i32, i32
  }
  func.func @transform_2(%arg0: i32) -> (i32, i32) {
    %c0_i32 = arith.constant 0 : i32
    %c0_i32_0 = arith.constant 0 : i32
    %c0_i32_1 = arith.constant 0 : i32
    return %c0_i32, %c0_i32_0 : i32, i32
  }
  func.func @transform_3(%arg0: i32) -> (i32, i32) {
    %c0_i32 = arith.constant 0 : i32
    %c0_i32_0 = arith.constant 0 : i32
    %c0_i32_1 = arith.constant 0 : i32
    return %c0_i32, %c0_i32_0 : i32, i32
  }
  func.func @transform_4(%arg0: i32) -> (i32, i32) {
    %c0_i32 = arith.constant 0 : i32
    %c0_i32_0 = arith.constant 0 : i32
    %c0_i32_1 = arith.constant 0 : i32
    return %c0_i32, %c0_i32_0 : i32, i32
  }
  func.func @transform_5(%arg0: i32) -> (i32, i32) {
    %c0_i32 = arith.constant 0 : i32
    %c0_i32_0 = arith.constant 0 : i32
    %c0_i32_1 = arith.constant 0 : i32
    return %c0_i32, %c0_i32_0 : i32, i32
  }
  func.func @transform_6(%arg0: i32) -> (i32, i32) {
    %c0_i32 = arith.constant 0 : i32
    %c0_i32_0 = arith.constant 0 : i32
    %c0_i32_1 = arith.constant 0 : i32
    return %c0_i32, %c0_i32_0 : i32, i32
  }
  func.func @transform_7(%arg0: i32) -> (i32, i32) {
    %c0_i32 = arith.constant 0 : i32
    %c0_i32_0 = arith.constant 0 : i32
    %c0_i32_1 = arith.constant 0 : i32
    return %c0_i32, %c0_i32_0 : i32, i32
  }
  func.func @transform_8(%arg0: i32) -> (i32, i32) {
    %c0_i32 = arith.constant 0 : i32
    %c0_i32_0 = arith.constant 0 : i32
    %c0_i32_1 = arith.constant 0 : i32
    return %c0_i32, %c0_i32_0 : i32, i32
  }
  func.func @transform_9(%arg0: i32) -> (i32, i32) {
    %c0_i32 = arith.constant 0 : i32
    %c0_i32_0 = arith.constant 0 : i32
    %c0_i32_1 = arith.constant 0 : i32
    return %c0_i32, %c0_i32_0 : i32, i32
  }
  func.func @transform_10(%arg0: i32) -> (i32, i32) {
    %c0_i32 = arith.constant 0 : i32
    %c0_i32_0 = arith.constant 0 : i32
    %c0_i32_1 = arith.constant 0 : i32
    return %c0_i32, %c0_i32_0 : i32, i32
  }
  func.func @transform_11(%arg0: i32) -> (i32, i32) {
    %c0_i32 = arith.constant 0 : i32
    %c0_i32_0 = arith.constant 0 : i32
    %c0_i32_1 = arith.constant 0 : i32
    return %c0_i32, %c0_i32_0 : i32, i32
  }
  func.func @transform_12(%arg0: i32) -> (i32, i32) {
    %c0_i32 = arith.constant 0 : i32
    %c0_i32_0 = arith.constant 0 : i32
    %c0_i32_1 = arith.constant 0 : i32
    return %c0_i32, %c0_i32_0 : i32, i32
  }
  func.func @transform_13(%arg0: i32) -> (i32, i32) {
    %c0_i32 = arith.constant 0 : i32
    %c0_i32_0 = arith.constant 0 : i32
    return %arg0, %c0_i32 : i32, i32
  }
  func.func @transform_14(%arg0: i32) -> (i32, i32) {
    %c0_i32 = arith.constant 0 : i32
    %c0_i32_0 = arith.constant 0 : i32
    return %arg0, %c0_i32 : i32, i32
  }
}

</mosaic_0001>

<llo_original>
// kernel: linear_a2c_forward.1
$region0: #{linear_a2c_forward.1}
  #allocation0 [shape = 'u32[]', space=smem, size = 0x4, offset = 0x4, fixed_abs, tag = 'smem constant byte address 0x4 - core index']
  #allocation1 [shape = 'u32[144,128]{1,0:T(1,128)}', space=vmem, size = 0x12000, scoped, tag = 'internal scratch']
  %s0 = inlined_call_operand.vmem [shape: bf16[16,16], index: 0, kind: input, shape index: {}]
  %s1 = inlined_call_operand.vmem [shape: bf16[16,64], index: 1, kind: input, shape index: {}]
  %s2 = inlined_call_operand.vmem [shape: f32[1,64], index: 2, kind: input, shape index: {}]
  %s3 = inlined_call_operand.vmem [shape: bf16[64,64], index: 3, kind: input, shape index: {}]
  %s4 = inlined_call_operand.vmem [shape: f32[1,64], index: 4, kind: input, shape index: {}]
  %s5 = inlined_call_operand.vmem [shape: bf16[64,128], index: 5, kind: input, shape index: {}]
  %s6 = inlined_call_operand.vmem [shape: f32[1,128], index: 6, kind: input, shape index: {}]
  %s7 = inlined_call_operand.vmem [shape: bf16[16,64], index: 7, kind: input, shape index: {}]
  %s8 = inlined_call_operand.vmem [shape: f32[1,64], index: 8, kind: input, shape index: {}]
  %s9 = inlined_call_operand.vmem [shape: bf16[64,64], index: 9, kind: input, shape index: {}]
  %s10 = inlined_call_operand.vmem [shape: f32[1,64], index: 10, kind: input, shape index: {}]
  %s11 = inlined_call_operand.vmem [shape: bf16[64,128], index: 11, kind: input, shape index: {}]
  %s12 = inlined_call_operand.vmem [shape: f32[1,128], index: 12, kind: input, shape index: {}]
  %s13 = inlined_call_operand.vmem [shape: f32[16,128], index: 13, kind: output, shape index: {0}]
  %s14 = inlined_call_operand.vmem [shape: f32[16,128], index: 14, kind: output, shape index: {1}]
  %15 = xla_tuple %s13, %s14
  %s16 = sld [smem:[#allocation0]]
  $region70: #{linear_a2c_forward.1} parent=0
    _
  %s18 = ssub.s32 1, %s16
  %s19 = scalar_select 0, %s18, %s16
  // Predicated region
  $region2: #{linear_a2c_forward.1} parent=0 // pred_check
    _
  $region3: #{linear_a2c_forward.1} parent=0 // pred_check_branch
    %21 = sbr.rel (0) target = $region5
  $region4: #{linear_a2c_forward.1} parent=0 // pred_region
    _
  $region5: #{linear_a2c_forward.1} parent=0 // pred_fallthru
    _
  // Predicated region
  $region6: #{linear_a2c_forward.1} parent=0 // pred_check
    _
  $region7: #{linear_a2c_forward.1} parent=0 // pred_check_branch
    %23 = sbr.rel (0) target = $region9
  $region8: #{linear_a2c_forward.1} parent=0 // pred_region
    _
  $region9: #{linear_a2c_forward.1} parent=0 // pred_fallthru
    _
  // Predicated region
  $region10: #{linear_a2c_forward.1} parent=0 // pred_check
    _
  $region11: #{linear_a2c_forward.1} parent=0 // pred_check_branch
    %25 = sbr.rel (0) target = $region13
  $region12: #{linear_a2c_forward.1} parent=0 // pred_region
    _
  $region13: #{linear_a2c_forward.1} parent=0 // pred_fallthru
    _
  // Predicated region
  $region14: #{linear_a2c_forward.1} parent=0 // pred_check
    _
  $region15: #{linear_a2c_forward.1} parent=0 // pred_check_branch
    %27 = sbr.rel (0) target = $region17
  $region16: #{linear_a2c_forward.1} parent=0 // pred_region
    _
  $region17: #{linear_a2c_forward.1} parent=0 // pred_fallthru
    _
  // Predicated region
  $region18: #{linear_a2c_forward.1} parent=0 // pred_check
    _
  $region19: #{linear_a2c_forward.1} parent=0 // pred_check_branch
    %29 = sbr.rel (0) target = $region21
  $region20: #{linear_a2c_forward.1} parent=0 // pred_region
    _
  $region21: #{linear_a2c_forward.1} parent=0 // pred_fallthru
    _
  // Predicated region
  $region22: #{linear_a2c_forward.1} parent=0 // pred_check
    _
  $region23: #{linear_a2c_forward.1} parent=0 // pred_check_branch
    %31 = sbr.rel (0) target = $region25
  $region24: #{linear_a2c_forward.1} parent=0 // pred_region
    _
  $region25: #{linear_a2c_forward.1} parent=0 // pred_fallthru
    _
  // Predicated region
  $region26: #{linear_a2c_forward.1} parent=0 // pred_check
    _
  $region27: #{linear_a2c_forward.1} parent=0 // pred_check_branch
    %33 = sbr.rel (0) target = $region29
  $region28: #{linear_a2c_forward.1} parent=0 // pred_region
    _
  $region29: #{linear_a2c_forward.1} parent=0 // pred_fallthru
    _
  // Predicated region
  $region30: #{linear_a2c_forward.1} parent=0 // pred_check
    _
  $region31: #{linear_a2c_forward.1} parent=0 // pred_check_branch
    %35 = sbr.rel (0) target = $region33
  $region32: #{linear_a2c_forward.1} parent=0 // pred_region
    _
  $region33: #{linear_a2c_forward.1} parent=0 // pred_fallthru
    _
  // Predicated region
  $region34: #{linear_a2c_forward.1} parent=0 // pred_check
    _
  $region35: #{linear_a2c_forward.1} parent=0 // pred_check_branch
    %37 = sbr.rel (0) target = $region37
  $region36: #{linear_a2c_forward.1} parent=0 // pred_region
    _
  $region37: #{linear_a2c_forward.1} parent=0 // pred_fallthru
    _
  // Predicated region
  $region38: #{linear_a2c_forward.1} parent=0 // pred_check
    _
  $region39: #{linear_a2c_forward.1} parent=0 // pred_check_branch
    %39 = sbr.rel (0) target = $region41
  $region40: #{linear_a2c_forward.1} parent=0 // pred_region
    _
  $region41: #{linear_a2c_forward.1} parent=0 // pred_fallthru
    _
  // Predicated region
  $region42: #{linear_a2c_forward.1} parent=0 // pred_check
    _
  $region43: #{linear_a2c_forward.1} parent=0 // pred_check_branch
    %41 = sbr.rel (0) target = $region45
  $region44: #{linear_a2c_forward.1} parent=0 // pred_region
    _
  $region45: #{linear_a2c_forward.1} parent=0 // pred_fallthru
    _
  // Predicated region
  $region46: #{linear_a2c_forward.1} parent=0 // pred_check
    _
  $region47: #{linear_a2c_forward.1} parent=0 // pred_check_branch
    %43 = sbr.rel (0) target = $region49
  $region48: #{linear_a2c_forward.1} parent=0 // pred_region
    _
  $region49: #{linear_a2c_forward.1} parent=0 // pred_fallthru
    _
  // Predicated region
  $region50: #{linear_a2c_forward.1} parent=0 // pred_check
    _
  $region51: #{linear_a2c_forward.1} parent=0 // pred_check_branch
    %45 = sbr.rel (0) target = $region53
  $region52: #{linear_a2c_forward.1} parent=0 // pred_region
    _
  $region53: #{linear_a2c_forward.1} parent=0 // pred_fallthru
    _
  %v47 = vld [vmem:[%s0] sm:$0xf]
  %v48 = vld [vmem:[%s0 + $0x4] sm:$0xf]
  %v49 = vld [vmem:[%s1] sm:$0xf]
  %v50 = vld [vmem:[%s1 + $0x4] sm:$0xf]
  %v51 = vld [vmem:[%s2] sm:$0x1]
  %v53 = vlaneseq
  %v54 = vshrl.u32 %v53, 7
  %v55 = vsub.s32 0, %v54
  %v56 = vrot.slane %v51, %v55
  %v60 = vunpack.c.l.b16 %v47
  %v61 = vunpack.c.l.b16 %v48
  %v62 = vpack.c.b16 %v61, %v60
  %v65 = vunpack.c.l.b16 %v49
  %v66 = vunpack.c.l.b16 %v50
  %v67 = vpack.c.b16 %v66, %v65
  %vm69 = vcmask 130048
  %v71 = vsel %vm69, %v62, 0
  %73 = vmatprep.subr.bf16.mxu0 0
  %74 = vmatpush1.bf16.msra.mxu0 0
  %75 = vmatprep.subr.bf16.mxu0 0
  %76 = vmatpush1.bf16.msra.mxu0 0
  %77 = vmatprep.subr.bf16.mxu0 0
  %78 = vmatpush1.bf16.msra.mxu0 0
  %79 = vmatprep.subr.bf16.mxu0 0
  %80 = vmatpush1.bf16.msra.mxu0 0
  %81 = vmatprep.subr.bf16.mxu0 0
  %82 = vmatpush1.bf16.msra.mxu0 0
  %83 = vmatprep.subr.bf16.mxu0 0
  %84 = vmatpush1.bf16.msra.mxu0 0
  %85 = vmatprep.subr.bf16.mxu0 0
  %86 = vmatpush1.bf16.msra.mxu0 0
  %87 = vmatprep.subr.bf16.mxu0 0
  %88 = vmatpush1.bf16.msra.mxu0 %v67
  %89 = vmatprep.subr.bf16.mxu0 0
  %90 = vmatpush2.bf16.msra.mxu0 0
  %91 = vmatprep.subr.bf16.mxu0 0
  %92 = vmatpush2.bf16.msra.mxu0 0
  %93 = vmatprep.subr.bf16.mxu0 0
  %94 = vmatpush2.bf16.msra.mxu0 0
  %95 = vmatprep.subr.bf16.mxu0 0
  %96 = vmatpush2.bf16.msra.mxu0 0
  %97 = vmatprep.subr.bf16.mxu0 0
  %98 = vmatpush2.bf16.msra.mxu0 0
  %99 = vmatprep.subr.bf16.mxu0 0
  %100 = vmatpush2.bf16.msra.mxu0 0
  %101 = vmatprep.subr.bf16.mxu0 0
  %102 = vmatpush2.bf16.msra.mxu0 0
  %103 = vmatprep.subr.bf16.mxu0 0
  %104 = vmatpush2.bf16.msra.mxu0 0
  %105 = vmatprep.mubr.bf16.mxu0 0
  %106 = vmatmul.mubr.bf16.gmra.mxu0 %v71
  %v107 = vpop.f32.mrf.mxu0
  %v108 = vadd.f32 %v56, %v107
  %v109 = vpop.f32.mrf.mxu0
  %v110 = vpop.f32.mrf.mxu0
  %v111 = vadd.f32 %v56, %v110
  %v112 = vpop.f32.mrf.mxu0
  %113 = vdwg.mxu0
  %v114 = vmax.f32 %v108, 0.0
  %v115 = vmax.f32 %v111, 0.0
  %v116 = vpack.c.bf16 %v115, %v114
  %v117 = vld [vmem:[%s3] sm:$0xf]
  %v118 = vld [vmem:[%s3 + $0x4] sm:$0xf]
  %v119 = vld [vmem:[%s3 + $0x8] sm:$0xf]
  %v120 = vld [vmem:[%s3 + $0xc] sm:$0xf]
  %v121 = vld [vmem:[%s3 + $0x10] sm:$0xf]
  %v122 = vld [vmem:[%s3 + $0x14] sm:$0xf]
  %v123 = vld [vmem:[%s3 + $0x18] sm:$0xf]
  %v124 = vld [vmem:[%s3 + $0x1c] sm:$0xf]
  %v125 = vld [vmem:[%s4] sm:$0x1]
  %v127 = vlaneseq
  %v128 = vshrl.u32 %v127, 7
  %v129 = vsub.s32 0, %v128
  %v130 = vrot.slane %v125, %v129
  %v140 = vunpack.c.l.b16 %v117
  %v141 = vunpack.c.l.b16 %v118
  %v142 = vunpack.c.l.b16 %v119
  %v143 = vunpack.c.l.b16 %v120
  %v144 = vunpack.c.l.b16 %v121
  %v145 = vunpack.c.l.b16 %v122
  %v146 = vunpack.c.l.b16 %v123
  %v147 = vunpack.c.l.b16 %v124
  %v148 = vpack.c.b16 %v141, %v140
  %v149 = vpack.c.b16 %v143, %v142
  %v150 = vpack.c.b16 %v145, %v144
  %v151 = vpack.c.b16 %v147, %v146
  %vm156 = vcmask 523264
  %v158 = vsel %vm156, %v116, 0
  %160 = vmatprep.subr.bf16.mxu0 0
  %161 = vmatpush1.bf16.msra.mxu0 0
  %162 = vmatprep.subr.bf16.mxu0 0
  %163 = vmatpush1.bf16.msra.mxu0 0
  %164 = vmatprep.subr.bf16.mxu0 0
  %165 = vmatpush1.bf16.msra.mxu0 0
  %166 = vmatprep.subr.bf16.mxu0 0
  %167 = vmatpush1.bf16.msra.mxu0 0
  %168 = vmatprep.subr.bf16.mxu0 0
  %169 = vmatpush1.bf16.msra.mxu0 %v151
  %170 = vmatprep.subr.bf16.mxu0 0
  %171 = vmatpush1.bf16.msra.mxu0 %v150
  %172 = vmatprep.subr.bf16.mxu0 0
  %173 = vmatpush1.bf16.msra.mxu0 %v149
  %174 = vmatprep.subr.bf16.mxu0 0
  %175 = vmatpush1.bf16.msra.mxu0 %v148
  %176 = vmatprep.subr.bf16.mxu0 0
  %177 = vmatpush2.bf16.msra.mxu0 0
  %178 = vmatprep.subr.bf16.mxu0 0
  %179 = vmatpush2.bf16.msra.mxu0 0
  %180 = vmatprep.subr.bf16.mxu0 0
  %181 = vmatpush2.bf16.msra.mxu0 0
  %182 = vmatprep.subr.bf16.mxu0 0
  %183 = vmatpush2.bf16.msra.mxu0 0
  %184 = vmatprep.subr.bf16.mxu0 0
  %185 = vmatpush2.bf16.msra.mxu0 0
  %186 = vmatprep.subr.bf16.mxu0 0
  %187 = vmatpush2.bf16.msra.mxu0 0
  %188 = vmatprep.subr.bf16.mxu0 0
  %189 = vmatpush2.bf16.msra.mxu0 0
  %190 = vmatprep.subr.bf16.mxu0 0
  %191 = vmatpush2.bf16.msra.mxu0 0
  %192 = vmatprep.mubr.bf16.mxu0 0
  %193 = vmatmul.mubr.bf16.gmra.mxu0 %v158
  %v194 = vpop.f32.mrf.mxu0
  %v195 = vadd.f32 %v130, %v194
  %v196 = vpop.f32.mrf.mxu0
  %v197 = vpop.f32.mrf.mxu0
  %v198 = vadd.f32 %v130, %v197
  %v199 = vpop.f32.mrf.mxu0
  %200 = vdwg.mxu0
  %v201 = vmax.f32 %v195, 0.0
  %v202 = vmax.f32 %v198, 0.0
  %v203 = vpack.c.bf16 %v202, %v201
  %v204 = vld [vmem:[%s5] sm:$0xf]
  %v205 = vld [vmem:[%s5 + $0x4] sm:$0xf]
  %v206 = vld [vmem:[%s5 + $0x8] sm:$0xf]
  %v207 = vld [vmem:[%s5 + $0xc] sm:$0xf]
  %v208 = vld [vmem:[%s5 + $0x10] sm:$0xf]
  %v209 = vld [vmem:[%s5 + $0x14] sm:$0xf]
  %v210 = vld [vmem:[%s5 + $0x18] sm:$0xf]
  %v211 = vld [vmem:[%s5 + $0x1c] sm:$0xf]
  %v212 = vld [vmem:[%s6] sm:$0x1]
  %v214 = vlaneseq
  %v215 = vshrl.u32 %v214, 7
  %v216 = vsub.s32 0, %v215
  %v217 = vrot.slane %v212, %v216
  %v227 = vunpack.c.l.b16 %v204
  %v228 = vunpack.c.l.b16 %v205
  %v229 = vunpack.c.l.b16 %v206
  %v230 = vunpack.c.l.b16 %v207
  %v231 = vunpack.c.l.b16 %v208
  %v232 = vunpack.c.l.b16 %v209
  %v233 = vunpack.c.l.b16 %v210
  %v234 = vunpack.c.l.b16 %v211
  %v235 = vpack.c.b16 %v228, %v227
  %v236 = vpack.c.b16 %v230, %v229
  %v237 = vpack.c.b16 %v232, %v231
  %v238 = vpack.c.b16 %v234, %v233
  %v244 = vsel %vm156, %v203, 0
  %246 = vmatprep.subr.bf16.mxu0 0
  %247 = vmatpush1.bf16.msra.mxu0 0
  %248 = vmatprep.subr.bf16.mxu0 0
  %249 = vmatpush1.bf16.msra.mxu0 0
  %250 = vmatprep.subr.bf16.mxu0 0
  %251 = vmatpush1.bf16.msra.mxu0 0
  %252 = vmatprep.subr.bf16.mxu0 0
  %253 = vmatpush1.bf16.msra.mxu0 0
  %254 = vmatprep.subr.bf16.mxu0 0
  %255 = vmatpush1.bf16.msra.mxu0 %v238
  %256 = vmatprep.subr.bf16.mxu0 0
  %257 = vmatpush1.bf16.msra.mxu0 %v237
  %258 = vmatprep.subr.bf16.mxu0 0
  %259 = vmatpush1.bf16.msra.mxu0 %v236
  %260 = vmatprep.subr.bf16.mxu0 0
  %261 = vmatpush1.bf16.msra.mxu0 %v235
  %262 = vmatprep.subr.bf16.mxu0 0
  %263 = vmatpush2.bf16.msra.mxu0 0
  %264 = vmatprep.subr.bf16.mxu0 0
  %265 = vmatpush2.bf16.msra.mxu0 0
  %266 = vmatprep.subr.bf16.mxu0 0
  %267 = vmatpush2.bf16.msra.mxu0 0
  %268 = vmatprep.subr.bf16.mxu0 0
  %269 = vmatpush2.bf16.msra.mxu0 0
  %270 = vmatprep.subr.bf16.mxu0 0
  %271 = vmatpush2.bf16.msra.mxu0 0
  %272 = vmatprep.subr.bf16.mxu0 0
  %273 = vmatpush2.bf16.msra.mxu0 0
  %274 = vmatprep.subr.bf16.mxu0 0
  %275 = vmatpush2.bf16.msra.mxu0 0
  %276 = vmatprep.subr.bf16.mxu0 0
  %277 = vmatpush2.bf16.msra.mxu0 0
  %278 = vmatprep.mubr.bf16.mxu0 0
  %279 = vmatmul.mubr.bf16.gmra.mxu0 %v244
  %v280 = vpop.f32.mrf.mxu0
  %v281 = vadd.f32 %v217, %v280
  %v282 = vpop.f32.mrf.mxu0
  %v283 = vpop.f32.mrf.mxu0
  %v284 = vadd.f32 %v217, %v283
  %v285 = vpop.f32.mrf.mxu0
  %286 = vdwg.mxu0
  %287 = vmax.xlane.f32.xlu0 %v281
  %v288 = vpop.xlane.xlu0 %287
  %289 = vmax.xlane.f32.xlu0 %v284
  %v290 = vpop.xlane.xlu0 %289
  %v291 = vsub.f32 %v281, %v288
  %v292 = vsub.f32 %v284, %v290
  %v293 = vmul.f32 %v291, 1.442695
  %v294 = vpow.pop %v293
  %v295 = vmul.f32 %v292, 1.442695
  %v296 = vpow.pop %v295
  %297 = vadd.xlane.f32.xlu0 %v294
  %v298 = vpop.xlane.xlu0 %297
  %299 = vadd.xlane.f32.xlu0 %v296
  %v300 = vpop.xlane.xlu0 %299
  %v301 = vrcp.pop %v298
  %v302 = vmul.f32 %v294, %v301
  %v303 = vrcp.pop %v300
  %v304 = vmul.f32 %v296, %v303
  %305 = vst [vmem:[%s14] sm:$0xff] %v302
  %306 = vst [vmem:[%s14 + $0x8] sm:$0xff] %v304
  %v307 = vld [vmem:[%s7] sm:$0xf]
  %v308 = vld [vmem:[%s7 + $0x4] sm:$0xf]
  %v309 = vld [vmem:[%s8] sm:$0x1]
  %v311 = vlaneseq
  %v312 = vshrl.u32 %v311, 7
  %v313 = vsub.s32 0, %v312
  %v314 = vrot.slane %v309, %v313
  %v318 = vunpack.c.l.b16 %v307
  %v319 = vunpack.c.l.b16 %v308
  %v320 = vpack.c.b16 %v319, %v318
  %322 = vmatprep.subr.bf16.mxu0 0
  %323 = vmatpush1.bf16.msra.mxu0 0
  %324 = vmatprep.subr.bf16.mxu0 0
  %325 = vmatpush1.bf16.msra.mxu0 0
  %326 = vmatprep.subr.bf16.mxu0 0
  %327 = vmatpush1.bf16.msra.mxu0 0
  %328 = vmatprep.subr.bf16.mxu0 0
  %329 = vmatpush1.bf16.msra.mxu0 0
  %330 = vmatprep.subr.bf16.mxu0 0
  %331 = vmatpush1.bf16.msra.mxu0 0
  %332 = vmatprep.subr.bf16.mxu0 0
  %333 = vmatpush1.bf16.msra.mxu0 0
  %334 = vmatprep.subr.bf16.mxu0 0
  %335 = vmatpush1.bf16.msra.mxu0 0
  %336 = vmatprep.subr.bf16.mxu0 0
  %337 = vmatpush1.bf16.msra.mxu0 %v320
  %338 = vmatprep.subr.bf16.mxu0 0
  %339 = vmatpush2.bf16.msra.mxu0 0
  %340 = vmatprep.subr.bf16.mxu0 0
  %341 = vmatpush2.bf16.msra.mxu0 0
  %342 = vmatprep.subr.bf16.mxu0 0
  %343 = vmatpush2.bf16.msra.mxu0 0
  %344 = vmatprep.subr.bf16.mxu0 0
  %345 = vmatpush2.bf16.msra.mxu0 0
  %346 = vmatprep.subr.bf16.mxu0 0
  %347 = vmatpush2.bf16.msra.mxu0 0
  %348 = vmatprep.subr.bf16.mxu0 0
  %349 = vmatpush2.bf16.msra.mxu0 0
  %350 = vmatprep.subr.bf16.mxu0 0
  %351 = vmatpush2.bf16.msra.mxu0 0
  %352 = vmatprep.subr.bf16.mxu0 0
  %353 = vmatpush2.bf16.msra.mxu0 0
  %354 = vmatprep.mubr.bf16.mxu0 0
  %355 = vmatmul.mubr.bf16.gmra.mxu0 %v71
  %v356 = vpop.f32.mrf.mxu0
  %v357 = vadd.f32 %v314, %v356
  %v358 = vpop.f32.mrf.mxu0
  %v359 = vpop.f32.mrf.mxu0
  %v360 = vadd.f32 %v314, %v359
  %v361 = vpop.f32.mrf.mxu0
  %362 = vdwg.mxu0
  %v363 = vmax.f32 %v357, 0.0
  %v364 = vmax.f32 %v360, 0.0
  %v365 = vpack.c.bf16 %v364, %v363
  %v366 = vld [vmem:[%s9] sm:$0xf]
  %v367 = vld [vmem:[%s9 + $0x4] sm:$0xf]
  %v368 = vld [vmem:[%s9 + $0x8] sm:$0xf]
  %v369 = vld [vmem:[%s9 + $0xc] sm:$0xf]
  %v370 = vld [vmem:[%s9 + $0x10] sm:$0xf]
  %v371 = vld [vmem:[%s9 + $0x14] sm:$0xf]
  %v372 = vld [vmem:[%s9 + $0x18] sm:$0xf]
  %v373 = vld [vmem:[%s9 + $0x1c] sm:$0xf]
  %v374 = vld [vmem:[%s10] sm:$0x1]
  %v376 = vlaneseq
  %v377 = vshrl.u32 %v376, 7
  %v378 = vsub.s32 0, %v377
  %v379 = vrot.slane %v374, %v378
  %v389 = vunpack.c.l.b16 %v366
  %v390 = vunpack.c.l.b16 %v367
  %v391 = vunpack.c.l.b16 %v368
  %v392 = vunpack.c.l.b16 %v369
  %v393 = vunpack.c.l.b16 %v370
  %v394 = vunpack.c.l.b16 %v371
  %v395 = vunpack.c.l.b16 %v372
  %v396 = vunpack.c.l.b16 %v373
  %v397 = vpack.c.b16 %v390, %v389
  %v398 = vpack.c.b16 %v392, %v391
  %v399 = vpack.c.b16 %v394, %v393
  %v400 = vpack.c.b16 %v396, %v395
  %v406 = vsel %vm156, %v365, 0
  %408 = vmatprep.subr.bf16.mxu0 0
  %409 = vmatpush1.bf16.msra.mxu0 0
  %410 = vmatprep.subr.bf16.mxu0 0
  %411 = vmatpush1.bf16.msra.mxu0 0
  %412 = vmatprep.subr.bf16.mxu0 0
  %413 = vmatpush1.bf16.msra.mxu0 0
  %414 = vmatprep.subr.bf16.mxu0 0
  %415 = vmatpush1.bf16.msra.mxu0 0
  %416 = vmatprep.subr.bf16.mxu0 0
  %417 = vmatpush1.bf16.msra.mxu0 %v400
  %418 = vmatprep.subr.bf16.mxu0 0
  %419 = vmatpush1.bf16.msra.mxu0 %v399
  %420 = vmatprep.subr.bf16.mxu0 0
  %421 = vmatpush1.bf16.msra.mxu0 %v398
  %422 = vmatprep.subr.bf16.mxu0 0
  %423 = vmatpush1.bf16.msra.mxu0 %v397
  %424 = vmatprep.subr.bf16.mxu0 0
  %425 = vmatpush2.bf16.msra.mxu0 0
  %426 = vmatprep.subr.bf16.mxu0 0
  %427 = vmatpush2.bf16.msra.mxu0 0
  %428 = vmatprep.subr.bf16.mxu0 0
  %429 = vmatpush2.bf16.msra.mxu0 0
  %430 = vmatprep.subr.bf16.mxu0 0
  %431 = vmatpush2.bf16.msra.mxu0 0
  %432 = vmatprep.subr.bf16.mxu0 0
  %433 = vmatpush2.bf16.msra.mxu0 0
  %434 = vmatprep.subr.bf16.mxu0 0
  %435 = vmatpush2.bf16.msra.mxu0 0
  %436 = vmatprep.subr.bf16.mxu0 0
  %437 = vmatpush2.bf16.msra.mxu0 0
  %438 = vmatprep.subr.bf16.mxu0 0
  %439 = vmatpush2.bf16.msra.mxu0 0
  %440 = vmatprep.mubr.bf16.mxu0 0
  %441 = vmatmul.mubr.bf16.gmra.mxu0 %v406
  %v442 = vpop.f32.mrf.mxu0
  %v443 = vadd.f32 %v379, %v442
  %v444 = vpop.f32.mrf.mxu0
  %v445 = vpop.f32.mrf.mxu0
  %v446 = vadd.f32 %v379, %v445
  %v447 = vpop.f32.mrf.mxu0
  %448 = vdwg.mxu0
  %v449 = vmax.f32 %v443, 0.0
  %v450 = vmax.f32 %v446, 0.0
  %v451 = vpack.c.bf16 %v450, %v449
  %v452 = vld [vmem:[%s11] sm:$0xf]
  %v453 = vld [vmem:[%s11 + $0x4] sm:$0xf]
  %v454 = vld [vmem:[%s11 + $0x8] sm:$0xf]
  %v455 = vld [vmem:[%s11 + $0xc] sm:$0xf]
  %v456 = vld [vmem:[%s11 + $0x10] sm:$0xf]
  %v457 = vld [vmem:[%s11 + $0x14] sm:$0xf]
  %v458 = vld [vmem:[%s11 + $0x18] sm:$0xf]
  %v459 = vld [vmem:[%s11 + $0x1c] sm:$0xf]
  %v460 = vld [vmem:[%s12] sm:$0x1]
  %v462 = vlaneseq
  %v463 = vshrl.u32 %v462, 7
  %v464 = vsub.s32 0, %v463
  %v465 = vrot.slane %v460, %v464
  %v475 = vunpack.c.l.b16 %v452
  %v476 = vunpack.c.l.b16 %v453
  %v477 = vunpack.c.l.b16 %v454
  %v478 = vunpack.c.l.b16 %v455
  %v479 = vunpack.c.l.b16 %v456
  %v480 = vunpack.c.l.b16 %v457
  %v481 = vunpack.c.l.b16 %v458
  %v482 = vunpack.c.l.b16 %v459
  %v483 = vpack.c.b16 %v476, %v475
  %v484 = vpack.c.b16 %v478, %v477
  %v485 = vpack.c.b16 %v480, %v479
  %v486 = vpack.c.b16 %v482, %v481
  %v492 = vsel %vm156, %v451, 0
  %494 = vmatprep.subr.bf16.mxu0 0
  %495 = vmatpush1.bf16.msra.mxu0 0
  %496 = vmatprep.subr.bf16.mxu0 0
  %497 = vmatpush1.bf16.msra.mxu0 0
  %498 = vmatprep.subr.bf16.mxu0 0
  %499 = vmatpush1.bf16.msra.mxu0 0
  %500 = vmatprep.subr.bf16.mxu0 0
  %501 = vmatpush1.bf16.msra.mxu0 0
  %502 = vmatprep.subr.bf16.mxu0 0
  %503 = vmatpush1.bf16.msra.mxu0 %v486
  %504 = vmatprep.subr.bf16.mxu0 0
  %505 = vmatpush1.bf16.msra.mxu0 %v485
  %506 = vmatprep.subr.bf16.mxu0 0
  %507 = vmatpush1.bf16.msra.mxu0 %v484
  %508 = vmatprep.subr.bf16.mxu0 0
  %509 = vmatpush1.bf16.msra.mxu0 %v483
  %510 = vmatprep.subr.bf16.mxu0 0
  %511 = vmatpush2.bf16.msra.mxu0 0
  %512 = vmatprep.subr.bf16.mxu0 0
  %513 = vmatpush2.bf16.msra.mxu0 0
  %514 = vmatprep.subr.bf16.mxu0 0
  %515 = vmatpush2.bf16.msra.mxu0 0
  %516 = vmatprep.subr.bf16.mxu0 0
  %517 = vmatpush2.bf16.msra.mxu0 0
  %518 = vmatprep.subr.bf16.mxu0 0
  %519 = vmatpush2.bf16.msra.mxu0 0
  %520 = vmatprep.subr.bf16.mxu0 0
  %521 = vmatpush2.bf16.msra.mxu0 0
  %522 = vmatprep.subr.bf16.mxu0 0
  %523 = vmatpush2.bf16.msra.mxu0 0
  %524 = vmatprep.subr.bf16.mxu0 0
  %525 = vmatpush2.bf16.msra.mxu0 0
  %526 = vmatprep.mubr.bf16.mxu0 0
  %527 = vmatmul.mubr.bf16.gmra.mxu0 %v492
  %v528 = vpop.f32.mrf.mxu0
  %v529 = vadd.f32 %v465, %v528
  %v530 = vpop.f32.mrf.mxu0
  %v531 = vpop.f32.mrf.mxu0
  %v532 = vadd.f32 %v465, %v531
  %v533 = vpop.f32.mrf.mxu0
  %534 = vdwg.mxu0
  %535 = vst [vmem:[%s13] sm:$0xff] %v529
  %536 = vst [vmem:[%s13 + $0x8] sm:$0xff] %v532
  // Predicated region
  $region54: #{linear_a2c_forward.1} parent=0 // pred_check
    _
  $region55: #{linear_a2c_forward.1} parent=0 // pred_check_branch
    %538 = sbr.rel (0) target = $region57
  $region56: #{linear_a2c_forward.1} parent=0 // pred_region
    _
  $region57: #{linear_a2c_forward.1} parent=0 // pred_fallthru
    _
  // Predicated region
  $region58: #{linear_a2c_forward.1} parent=0 // pred_check
    _
  $region59: #{linear_a2c_forward.1} parent=0 // pred_check_branch
    %540 = sbr.rel (0) target = $region61
  $region60: #{linear_a2c_forward.1} parent=0 // pred_region
    _
  $region61: #{linear_a2c_forward.1} parent=0 // pred_fallthru
    _
  // Predicated region
  $region62: #{linear_a2c_forward.1} parent=0 // pred_check
    _
  $region63: #{linear_a2c_forward.1} parent=0 // pred_check_branch
    %542 = sbr.rel (0) target = $region65
  $region64: #{linear_a2c_forward.1} parent=0 // pred_region
    _
  $region65: #{linear_a2c_forward.1} parent=0 // pred_fallthru
    _
  // Predicated region
  $region66: #{linear_a2c_forward.1} parent=0 // pred_check
    _
  $region67: #{linear_a2c_forward.1} parent=0 // pred_check_branch
    %544 = sbr.rel (0) target = $region69
  $region68: #{linear_a2c_forward.1} parent=0 // pred_region
    _
  $region69: #{linear_a2c_forward.1} parent=0 // pred_fallthru
    _

</llo_original>
